<compile_context>
chip_gen: v7x
topology: tpu7x:2x2x1
jax: 0.10.0
libtpu: 0.0.40
codegen_flags: <defaults>
</compile_context>

<pallas_src>
import functools

import jax
import jax.numpy as jnp
from jax import lax
from jax.experimental import pallas as pl
from jax.experimental.pallas import tpu as pltpu


def _round_up(n, m):
    return (n + m - 1) // m * m


def _simplicial_wrapper_kernel(x_ref, wv_ref, bv_ref, wl_ref, bl_ref, o_ref,
                               acc_ref, *, L, d_in, tk, mask_k):
    # x_ref  : [tb, tk]       f32  streamed image columns (cast to bf16 here)
    # wv_ref : [tk, D_v]      bf16 synthetic vision weights (K-tiled)
    # bv_ref : [1, D_v]       f32
    # wl_ref : [L, D_v, Vp]   bf16 per-chunk wrapper Linear weights (resident)
    # bl_ref : [L, 1, Vp]     f32  per-chunk bias (1/temperature folded in)
    # o_ref  : [L, tb, Vp]    f32  per-chunk softmax output (lane-dense slabs)
    # acc_ref: [tb, D_v]      f32  feats accumulator across the K axis
    k = pl.program_id(1)

    @pl.when(k == 0)
    def _init():
        acc_ref[...] = jnp.zeros_like(acc_ref)

    x = x_ref[...]
    if mask_k:
        # Last K tile extends past D_in: zero the out-of-bounds columns so
        # (garbage x) * (zero-padded Wv rows) cannot inject NaN/Inf into feats.
        col = lax.broadcasted_iota(jnp.int32, x.shape, 1)
        x = jnp.where(col < (d_in - k * tk), x, 0.0)
    # bf16 cast on the VPU hides under the x DMA; f32 MXU accumulation.
    acc_ref[...] += jnp.dot(x.astype(jnp.bfloat16), wv_ref[...],
                            preferred_element_type=jnp.float32)

    @pl.when(k == pl.num_programs(1) - 1)
    def _finalize():
        feats = jnp.maximum(acc_ref[...] + bv_ref[...], 0.0).astype(jnp.bfloat16)
        for l in range(L):  # static unroll; L is small
            # Per-chunk Linear (1/temperature already folded into wl/bl).
            h = jnp.dot(feats, wl_ref[l],
                        preferred_element_type=jnp.float32) + bl_ref[l]
            # Per-chunk softmax: clean lane-axis reductions (Vp % 128 == 0),
            # padded lanes carry a -1e30 bias -> exp underflows to 0.
            m = jnp.max(h, axis=-1, keepdims=True)
            e = jnp.exp(h - m)
            s = jnp.sum(e, axis=-1, keepdims=True)
            o_ref[l] = (e * pl.reciprocal(s, approx=False)).astype(o_ref.dtype)


def simplicial_wrapper_forward(x_nchw, wv, bv, wl, bl, *, L, temperature,
                               batch_tile=256, k_tile=2048):
    """x_nchw: [B, C, H, W] float32.  Returns [B, hidden_size] float32."""
    B = x_nchw.shape[0]
    x_flat = x_nchw.reshape(B, -1)                   # native f32; cast in-kernel
    D_in = x_flat.shape[1]
    D_v = wv.shape[1]
    hidden = wl.shape[1]
    assert hidden % L == 0, "hidden_size must be divisible by L"
    V = hidden // L
    Vp = _round_up(V, 128)                           # lane-aligned chunk width

    inv_t = jnp.float32(1.0 if temperature is None else 1.0 / temperature)

    # ---- one-time weight prep (rides the existing cast pass; no x traffic) ----
    # Fold 1/temperature into the second Linear, rearrange to per-chunk layout,
    # pad chunk lanes with zero weights / -1e30 bias so they vanish in softmax.
    wl_s = (wl.astype(jnp.float32) * inv_t).reshape(D_v, L, V).transpose(1, 0, 2)
    bl_s = (bl.astype(jnp.float32) * inv_t).reshape(L, V)
    if Vp != V:
        wl_s = jnp.pad(wl_s, ((0, 0), (0, 0), (0, Vp - V)))
        bl_s = jnp.pad(bl_s, ((0, 0), (0, Vp - V)), constant_values=-1e30)
    wl16 = wl_s.astype(jnp.bfloat16)                 # (L, D_v, Vp)
    bl32 = bl_s.reshape(L, 1, Vp)                    # (L, 1, Vp) f32
    bv32 = bv.astype(jnp.float32).reshape(1, D_v)    # (1, D_v)   f32
    wv16 = wv.astype(jnp.bfloat16)                   # (D_in, D_v)

    # ---- K-reduction tiling over D_in ----
    tk = min(_round_up(k_tile, 128), _round_up(D_in, 128))
    Dp = _round_up(D_in, tk)
    mask_k = Dp != D_in
    if mask_k:
        # Zero rows so the last (partial) K tile multiplies against zeros.
        wv16 = jnp.pad(wv16, ((0, Dp - D_in), (0, 0)))
    nk = Dp // tk

    # ---- batch tiling: multiple of 16 (bf16 sublane packing), never < 8 ----
    tb = min(_round_up(batch_tile, 16), _round_up(B, 16))
    nb = pl.cdiv(B, tb)

    # ---- VMEM budget: BlockSpec double-buffers every operand (including the
    #      constant-index weights) plus the f32 feats accumulator scratch. ----
    resident = (2 * tb * tk * 4              # x tile (f32 now, streamed)
                + 2 * tk * D_v * 2           # Wv tile (bf16)
                + 2 * L * D_v * Vp * 2       # Wl (bf16)
                + 2 * L * Vp * 4             # bl
                + 2 * D_v * 4                # bv
                + 2 * L * tb * Vp * 4        # out tile (f32)
                + tb * D_v * 4)              # feats accumulator
    try:
        vmem_cap = int(pltpu.get_tpu_info().vmem_capacity_bytes)
    except Exception:
        vmem_cap = 64 << 20                  # conservative (v7x per-TC)
    vmem_limit = int(min(vmem_cap, max(32 << 20, resident + (8 << 20))))

    flops = 2 * B * Dp * D_v + 2 * B * D_v * L * Vp
    bytes_accessed = (x_flat.size * 4 + wv16.size * 2 + wl16.size * 2
                      + bv32.size * 4 + bl32.size * 4 + L * B * Vp * 4)

    kernel = functools.partial(_simplicial_wrapper_kernel,
                               L=L, d_in=D_in, tk=tk, mask_k=mask_k)
    out3 = pl.pallas_call(
        kernel,
        out_shape=jax.ShapeDtypeStruct((L, B, Vp), jnp.float32),
        grid_spec=pltpu.PrefetchScalarGridSpec(
            num_scalar_prefetch=0,
            grid=(nb, nk),
            in_specs=[
                pl.BlockSpec((tb, tk), lambda i, k: (i, k)),          # x: streamed
                pl.BlockSpec((tk, D_v), lambda i, k: (k, 0)),         # Wv: K-tiled
                pl.BlockSpec((1, D_v), lambda i, k: (0, 0)),          # bv: resident
                pl.BlockSpec((L, D_v, Vp), lambda i, k: (0, 0, 0)),   # Wl: resident
                pl.BlockSpec((L, 1, Vp), lambda i, k: (0, 0, 0)),     # bl: resident
            ],
            out_specs=pl.BlockSpec((L, tb, Vp), lambda i, k: (0, i, 0)),
            scratch_shapes=[pltpu.VMEM((tb, D_v), jnp.float32)],
        ),
        compiler_params=pltpu.CompilerParams(
            dimension_semantics=("parallel", "arbitrary"),
            vmem_limit_bytes=vmem_limit,
        ),
        cost_estimate=pl.CostEstimate(flops=int(flops),
                                      transcendentals=int(B * L * Vp),
                                      bytes_accessed=int(bytes_accessed)),
    )(x_flat, wv16, bv32, wl16, bl32)

    # Layout plumbing only: lane-dense (L, B, Vp) kernel output -> (B, hidden).
    return jnp.transpose(out3, (1, 0, 2))[:, :, :V].reshape(B, hidden)


def _reference_forward(x_nchw, wv, bv, wl, bl, *, L, temperature,
                       mxu_bf16=True):
    """Pure-JAX reference.  mxu_bf16=True mirrors the kernel's bf16 MXU math
    (including the 1/temperature fold into Wl/bl)."""
    B = x_nchw.shape[0]
    x_flat = x_nchw.reshape(B, -1)
    inv_t = 1.0 if temperature is None else 1.0 / temperature
    if mxu_bf16:
        feats = jnp.dot(x_flat.astype(jnp.bfloat16), wv.astype(jnp.bfloat16),
                        preferred_element_type=jnp.float32)
        feats = jnp.maximum(feats + bv, 0.0)
        wl_s = (wl.astype(jnp.float32) * inv_t).astype(jnp.bfloat16)
        bl_s = bl.astype(jnp.float32) * inv_t
        h = jnp.dot(feats.astype(jnp.bfloat16), wl_s,
                    preferred_element_type=jnp.float32) + bl_s
        vs = h.reshape(B, L, -1)
    else:
        feats = jnp.maximum(x_flat @ wv + bv, 0.0)
        h = feats @ wl + bl
        vs = h.reshape(B, L, -1)
        if temperature is not None:
            vs = vs / temperature
    vs = jax.nn.softmax(vs, axis=-1)
    return vs.reshape(B, -1)


if __name__ == "__main__":
    # Small shapes consistent with the module's forward.
    B, C, H, W = 2, 4, 16, 16          # vision input (NCHW)
    v_output_dim = 64                   # vision_module output dim
    hidden_size = 32                    # wrapper Linear output dim
    L = 4                               # simplicial chunks (hidden % L == 0)
    temperature = 0.5

    key = jax.random.PRNGKey(0)
    kx, kwv, kbv, kwl, kbl = jax.random.split(key, 5)

    x = jax.random.normal(kx, (B, C, H, W), dtype=jnp.float32)
    D_in = C * H * W
    wv = jax.random.normal(kwv, (D_in, v_output_dim), dtype=jnp.float32) * 0.05
    bv = jax.random.normal(kbv, (1, v_output_dim), dtype=jnp.float32) * 0.05
    wl = jax.random.normal(kwl, (v_output_dim, hidden_size), dtype=jnp.float32) * 0.1
    bl = jax.random.normal(kbl, (1, hidden_size), dtype=jnp.float32) * 0.1

    out = simplicial_wrapper_forward(x, wv, bv, wl, bl,
                                     L=L, temperature=temperature)
    out = jax.block_until_ready(out)

    ref_bf16 = _reference_forward(x, wv, bv, wl, bl, L=L,
                                  temperature=temperature, mxu_bf16=True)
    ref_f32 = _reference_forward(x, wv, bv, wl, bl, L=L,
                                 temperature=temperature, mxu_bf16=False)

    assert out.shape == (B, hidden_size)
    # Tight check vs. a reference with matching bf16-MXU / f32-accumulate math.
    assert jnp.allclose(out, ref_bf16, atol=1e-2, rtol=1e-2)
    # Loose check vs. the full f32 reference (intentional bf16 precision trade).
    assert jnp.allclose(out, ref_f32, atol=5e-2, rtol=5e-2)
    # Each simplicial chunk sums to 1 (exact reciprocal in the softmax).
    assert jnp.allclose(out.reshape(B, L, hidden_size // L).sum(-1), 1.0,
                        atol=1e-3)

    print("KERNEL_OK")
</pallas_src>

<mosaic_0001>
module attributes {stable_mosaic.version = 11 : i64} {
  func.func @_simplicial_wrapper_kernel(%arg0: i32, %arg1: i32, %arg2: memref<16x1024xf32, #tpu.memory_space<vmem>>, %arg3: memref<1024x64xbf16, #tpu.memory_space<vmem>>, %arg4: memref<1x64xf32, #tpu.memory_space<vmem>>, %arg5: memref<4x64x128xbf16, #tpu.memory_space<vmem>>, %arg6: memref<4x1x128xf32, #tpu.memory_space<vmem>>, %arg7: memref<4x16x128xf32, #tpu.memory_space<vmem>>, %arg8: memref<16x64xf32, #tpu.memory_space<vmem>>) attributes {dimension_semantics = [#tpu.dimension_semantics<parallel>, #tpu.dimension_semantics<arbitrary>], iteration_bounds = array<i64: 1, 1>, scalar_prefetch = 0 : i64, scratch_operands = 1 : i64, tpu.core_type = #tpu.core_type<tc>, window_params = [{transform_indices = @transform_0, window_bounds = array<i64: 16, 1024>}, {transform_indices = @transform_1, window_bounds = array<i64: 1024, 64>}, {pipeline_mode = #tpu.pipeline_mode<synchronous>, transform_indices = @transform_2, window_bounds = array<i64: 1, 64>}, {pipeline_mode = #tpu.pipeline_mode<synchronous>, transform_indices = @transform_3, window_bounds = array<i64: 4, 64, 128>}, {pipeline_mode = #tpu.pipeline_mode<synchronous>, transform_indices = @transform_4, window_bounds = array<i64: 4, 1, 128>}, {transform_indices = @transform_5, window_bounds = array<i64: 4, 16, 128>}]} {
    %c0_i32 = arith.constant 0 : i32
    %0 = arith.cmpi eq, %arg1, %c0_i32 : i32
    %1 = arith.extui %0 : i1 to i32
    %c0_i32_0 = arith.constant 0 : i32
    %2 = arith.cmpi ne, %1, %c0_i32_0 : i32
    scf.if %2 {
      %cst_10 = arith.constant 0.000000e+00 : f32
      %13 = vector.broadcast %cst_10 : f32 to vector<16x64xf32>
      %c0_11 = arith.constant 0 : index
      %c0_12 = arith.constant 0 : index
      %14 = vector.load %arg8[%c0_11, %c0_12] : memref<16x64xf32, #tpu.memory_space<vmem>>, vector<16x64xf32>
      tpu.vector_store %arg8[%c0_11, %c0_12], %13 {strides = array<i32>} : memref<16x64xf32, #tpu.memory_space<vmem>>, vector<16x64xf32>,
    } else {
    }
    %c0 = arith.constant 0 : index
    %c0_1 = arith.constant 0 : index
    %3 = vector.load %arg2[%c0, %c0_1] : memref<16x1024xf32, #tpu.memory_space<vmem>>, vector<16x1024xf32>
    %c0_2 = arith.constant 0 : index
    %c0_3 = arith.constant 0 : index
    %4 = vector.load %arg8[%c0_2, %c0_3] : memref<16x64xf32, #tpu.memory_space<vmem>>, vector<16x64xf32>
    %5 = arith.truncf %3 : vector<16x1024xf32> to vector<16x1024xbf16>
    %c0_4 = arith.constant 0 : index
    %c0_5 = arith.constant 0 : index
    %6 = vector.load %arg3[%c0_4, %c0_5] : memref<1024x64xbf16, #tpu.memory_space<vmem>>, vector<1024x64xbf16>
    %cst = arith.constant dense<0.000000e+00> : vector<16x64xf32>
    %7 = tpu.matmul %5, %6, %cst {dimension_numbers = #tpu.dot_dimension_numbers<[1], [0], [0], [1], [0, 0, 1, 1], [], []>} : vector<16x1024xbf16>, vector<1024x64xbf16>, vector<16x64xf32> -> vector<16x64xf32>
    %8 = arith.addf %4, %7 : vector<16x64xf32>
    %c0_6 = arith.constant 0 : index
    %c0_7 = arith.constant 0 : index
    %9 = vector.load %arg8[%c0_6, %c0_7] : memref<16x64xf32, #tpu.memory_space<vmem>>, vector<16x64xf32>
    tpu.vector_store %arg8[%c0_6, %c0_7], %8 {strides = array<i32>} : memref<16x64xf32, #tpu.memory_space<vmem>>, vector<16x64xf32>,
    %c0_i32_8 = arith.constant 0 : i32
    %10 = arith.cmpi eq, %arg1, %c0_i32_8 : i32
    %11 = arith.extui %10 : i1 to i32
    %c0_i32_9 = arith.constant 0 : i32
    %12 = arith.cmpi ne, %11, %c0_i32_9 : i32
    scf.if %12 {
      %c0_10 = arith.constant 0 : index
      %c0_11 = arith.constant 0 : index
      %13 = vector.load %arg8[%c0_10, %c0_11] : memref<16x64xf32, #tpu.memory_space<vmem>>, vector<16x64xf32>
      %c0_12 = arith.constant 0 : index
      %c0_13 = arith.constant 0 : index
      %14 = vector.load %arg4[%c0_12, %c0_13] : memref<1x64xf32, #tpu.memory_space<vmem>>, vector<1x64xf32>
      %15 = vector.broadcast %14 : vector<1x64xf32> to vector<16x64xf32>
      %16 = arith.addf %13, %15 : vector<16x64xf32>
      %cst_14 = arith.constant 0.000000e+00 : f32
      %17 = vector.broadcast %cst_14 : f32 to vector<16x64xf32>
      %18 = arith.maximumf %16, %17 : vector<16x64xf32>
      %19 = arith.truncf %18 : vector<16x64xf32> to vector<16x64xbf16>
      %c0_15 = arith.constant 0 : index
      %c0_16 = arith.constant 0 : index
      %c0_17 = arith.constant 0 : index
      %20 = vector.load %arg5[%c0_15, %c0_16, %c0_17] : memref<4x64x128xbf16, #tpu.memory_space<vmem>>, vector<1x64x128xbf16>
      %21 = vector.shape_cast %20 : vector<1x64x128xbf16> to vector<64x128xbf16>
      %cst_18 = arith.constant dense<0.000000e+00> : vector<16x128xf32>
      %22 = tpu.matmul %19, %21, %cst_18 {dimension_numbers = #tpu.dot_dimension_numbers<[1], [0], [0], [1], [0, 0, 1, 1], [], []>} : vector<16x64xbf16>, vector<64x128xbf16>, vector<16x128xf32> -> vector<16x128xf32>
      %c0_19 = arith.constant 0 : index
      %c0_20 = arith.constant 0 : index
      %c0_21 = arith.constant 0 : index
      %23 = vector.load %arg6[%c0_19, %c0_20, %c0_21] : memref<4x1x128xf32, #tpu.memory_space<vmem>>, vector<1x1x128xf32>
      %24 = vector.shape_cast %23 : vector<1x1x128xf32> to vector<1x128xf32>
      %25 = vector.broadcast %24 : vector<1x128xf32> to vector<16x128xf32>
      %26 = arith.addf %22, %25 : vector<16x128xf32>
      %cst_22 = arith.constant dense<0xFF800000> : vector<16xf32>
      %27 = vector.multi_reduction <maximumf>, %26, %cst_22 [1] : vector<16x128xf32> to vector<16xf32>
      %28 = vector.shape_cast %27 : vector<16xf32> to vector<16x1xf32>
      %29 = vector.broadcast %28 : vector<16x1xf32> to vector<16x128xf32>
      %30 = arith.subf %26, %29 : vector<16x128xf32>
      %31 = math.exp %30 : vector<16x128xf32>
      %cst_23 = arith.constant dense<0.000000e+00> : vector<16xf32>
      %32 = vector.multi_reduction <add>, %31, %cst_23 [1] : vector<16x128xf32> to vector<16xf32>
      %33 = vector.shape_cast %32 : vector<16xf32> to vector<16x1xf32>
      %34 = tpu.reciprocal %33 : vector<16x1xf32> -> vector<16x1xf32>
      %35 = vector.broadcast %34 : vector<16x1xf32> to vector<16x128xf32>
      %36 = arith.mulf %31, %35 : vector<16x128xf32>
      %c0_24 = arith.constant 0 : index
      %c0_25 = arith.constant 0 : index
      %c0_26 = arith.constant 0 : index
      %37 = vector.load %arg7[%c0_24, %c0_25, %c0_26] : memref<4x16x128xf32, #tpu.memory_space<vmem>>, vector<1x16x128xf32>
      %38 = vector.shape_cast %37 : vector<1x16x128xf32> to vector<16x128xf32>
      %39 = vector.shape_cast %36 : vector<16x128xf32> to vector<1x16x128xf32>
      tpu.vector_store %arg7[%c0_24, %c0_25, %c0_26], %39 {strides = array<i32>} : memref<4x16x128xf32, #tpu.memory_space<vmem>>, vector<1x16x128xf32>,
      %c1 = arith.constant 1 : index
      %c0_27 = arith.constant 0 : index
      %c0_28 = arith.constant 0 : index
      %40 = vector.load %arg5[%c1, %c0_27, %c0_28] : memref<4x64x128xbf16, #tpu.memory_space<vmem>>, vector<1x64x128xbf16>
      %41 = vector.shape_cast %40 : vector<1x64x128xbf16> to vector<64x128xbf16>
      %cst_29 = arith.constant dense<0.000000e+00> : vector<16x128xf32>
      %42 = tpu.matmul %19, %41, %cst_29 {dimension_numbers = #tpu.dot_dimension_numbers<[1], [0], [0], [1], [0, 0, 1, 1], [], []>} : vector<16x64xbf16>, vector<64x128xbf16>, vector<16x128xf32> -> vector<16x128xf32>
      %c1_30 = arith.constant 1 : index
      %c0_31 = arith.constant 0 : index
      %c0_32 = arith.constant 0 : index
      %43 = vector.load %arg6[%c1_30, %c0_31, %c0_32] : memref<4x1x128xf32, #tpu.memory_space<vmem>>, vector<1x1x128xf32>
      %44 = vector.shape_cast %43 : vector<1x1x128xf32> to vector<1x128xf32>
      %45 = vector.broadcast %44 : vector<1x128xf32> to vector<16x128xf32>
      %46 = arith.addf %42, %45 : vector<16x128xf32>
      %cst_33 = arith.constant dense<0xFF800000> : vector<16xf32>
      %47 = vector.multi_reduction <maximumf>, %46, %cst_33 [1] : vector<16x128xf32> to vector<16xf32>
      %48 = vector.shape_cast %47 : vector<16xf32> to vector<16x1xf32>
      %49 = vector.broadcast %48 : vector<16x1xf32> to vector<16x128xf32>
      %50 = arith.subf %46, %49 : vector<16x128xf32>
      %51 = math.exp %50 : vector<16x128xf32>
      %cst_34 = arith.constant dense<0.000000e+00> : vector<16xf32>
      %52 = vector.multi_reduction <add>, %51, %cst_34 [1] : vector<16x128xf32> to vector<16xf32>
      %53 = vector.shape_cast %52 : vector<16xf32> to vector<16x1xf32>
      %54 = tpu.reciprocal %53 : vector<16x1xf32> -> vector<16x1xf32>
      %55 = vector.broadcast %54 : vector<16x1xf32> to vector<16x128xf32>
      %56 = arith.mulf %51, %55 : vector<16x128xf32>
      %c1_35 = arith.constant 1 : index
      %c0_36 = arith.constant 0 : index
      %c0_37 = arith.constant 0 : index
      %57 = vector.load %arg7[%c1_35, %c0_36, %c0_37] : memref<4x16x128xf32, #tpu.memory_space<vmem>>, vector<1x16x128xf32>
      %58 = vector.shape_cast %57 : vector<1x16x128xf32> to vector<16x128xf32>
      %59 = vector.shape_cast %56 : vector<16x128xf32> to vector<1x16x128xf32>
      tpu.vector_store %arg7[%c1_35, %c0_36, %c0_37], %59 {strides = array<i32>} : memref<4x16x128xf32, #tpu.memory_space<vmem>>, vector<1x16x128xf32>,
      %c2 = arith.constant 2 : index
      %c0_38 = arith.constant 0 : index
      %c0_39 = arith.constant 0 : index
      %60 = vector.load %arg5[%c2, %c0_38, %c0_39] : memref<4x64x128xbf16, #tpu.memory_space<vmem>>, vector<1x64x128xbf16>
      %61 = vector.shape_cast %60 : vector<1x64x128xbf16> to vector<64x128xbf16>
      %cst_40 = arith.constant dense<0.000000e+00> : vector<16x128xf32>
      %62 = tpu.matmul %19, %61, %cst_40 {dimension_numbers = #tpu.dot_dimension_numbers<[1], [0], [0], [1], [0, 0, 1, 1], [], []>} : vector<16x64xbf16>, vector<64x128xbf16>, vector<16x128xf32> -> vector<16x128xf32>
      %c2_41 = arith.constant 2 : index
      %c0_42 = arith.constant 0 : index
      %c0_43 = arith.constant 0 : index
      %63 = vector.load %arg6[%c2_41, %c0_42, %c0_43] : memref<4x1x128xf32, #tpu.memory_space<vmem>>, vector<1x1x128xf32>
      %64 = vector.shape_cast %63 : vector<1x1x128xf32> to vector<1x128xf32>
      %65 = vector.broadcast %64 : vector<1x128xf32> to vector<16x128xf32>
      %66 = arith.addf %62, %65 : vector<16x128xf32>
      %cst_44 = arith.constant dense<0xFF800000> : vector<16xf32>
      %67 = vector.multi_reduction <maximumf>, %66, %cst_44 [1] : vector<16x128xf32> to vector<16xf32>
      %68 = vector.shape_cast %67 : vector<16xf32> to vector<16x1xf32>
      %69 = vector.broadcast %68 : vector<16x1xf32> to vector<16x128xf32>
      %70 = arith.subf %66, %69 : vector<16x128xf32>
      %71 = math.exp %70 : vector<16x128xf32>
      %cst_45 = arith.constant dense<0.000000e+00> : vector<16xf32>
      %72 = vector.multi_reduction <add>, %71, %cst_45 [1] : vector<16x128xf32> to vector<16xf32>
      %73 = vector.shape_cast %72 : vector<16xf32> to vector<16x1xf32>
      %74 = tpu.reciprocal %73 : vector<16x1xf32> -> vector<16x1xf32>
      %75 = vector.broadcast %74 : vector<16x1xf32> to vector<16x128xf32>
      %76 = arith.mulf %71, %75 : vector<16x128xf32>
      %c2_46 = arith.constant 2 : index
      %c0_47 = arith.constant 0 : index
      %c0_48 = arith.constant 0 : index
      %77 = vector.load %arg7[%c2_46, %c0_47, %c0_48] : memref<4x16x128xf32, #tpu.memory_space<vmem>>, vector<1x16x128xf32>
      %78 = vector.shape_cast %77 : vector<1x16x128xf32> to vector<16x128xf32>
      %79 = vector.shape_cast %76 : vector<16x128xf32> to vector<1x16x128xf32>
      tpu.vector_store %arg7[%c2_46, %c0_47, %c0_48], %79 {strides = array<i32>} : memref<4x16x128xf32, #tpu.memory_space<vmem>>, vector<1x16x128xf32>,
      %c3 = arith.constant 3 : index
      %c0_49 = arith.constant 0 : index
      %c0_50 = arith.constant 0 : index
      %80 = vector.load %arg5[%c3, %c0_49, %c0_50] : memref<4x64x128xbf16, #tpu.memory_space<vmem>>, vector<1x64x128xbf16>
      %81 = vector.shape_cast %80 : vector<1x64x128xbf16> to vector<64x128xbf16>
      %cst_51 = arith.constant dense<0.000000e+00> : vector<16x128xf32>
      %82 = tpu.matmul %19, %81, %cst_51 {dimension_numbers = #tpu.dot_dimension_numbers<[1], [0], [0], [1], [0, 0, 1, 1], [], []>} : vector<16x64xbf16>, vector<64x128xbf16>, vector<16x128xf32> -> vector<16x128xf32>
      %c3_52 = arith.constant 3 : index
      %c0_53 = arith.constant 0 : index
      %c0_54 = arith.constant 0 : index
      %83 = vector.load %arg6[%c3_52, %c0_53, %c0_54] : memref<4x1x128xf32, #tpu.memory_space<vmem>>, vector<1x1x128xf32>
      %84 = vector.shape_cast %83 : vector<1x1x128xf32> to vector<1x128xf32>
      %85 = vector.broadcast %84 : vector<1x128xf32> to vector<16x128xf32>
      %86 = arith.addf %82, %85 : vector<16x128xf32>
      %cst_55 = arith.constant dense<0xFF800000> : vector<16xf32>
      %87 = vector.multi_reduction <maximumf>, %86, %cst_55 [1] : vector<16x128xf32> to vector<16xf32>
      %88 = vector.shape_cast %87 : vector<16xf32> to vector<16x1xf32>
      %89 = vector.broadcast %88 : vector<16x1xf32> to vector<16x128xf32>
      %90 = arith.subf %86, %89 : vector<16x128xf32>
      %91 = math.exp %90 : vector<16x128xf32>
      %cst_56 = arith.constant dense<0.000000e+00> : vector<16xf32>
      %92 = vector.multi_reduction <add>, %91, %cst_56 [1] : vector<16x128xf32> to vector<16xf32>
      %93 = vector.shape_cast %92 : vector<16xf32> to vector<16x1xf32>
      %94 = tpu.reciprocal %93 : vector<16x1xf32> -> vector<16x1xf32>
      %95 = vector.broadcast %94 : vector<16x1xf32> to vector<16x128xf32>
      %96 = arith.mulf %91, %95 : vector<16x128xf32>
      %c3_57 = arith.constant 3 : index
      %c0_58 = arith.constant 0 : index
      %c0_59 = arith.constant 0 : index
      %97 = vector.load %arg7[%c3_57, %c0_58, %c0_59] : memref<4x16x128xf32, #tpu.memory_space<vmem>>, vector<1x16x128xf32>
      %98 = vector.shape_cast %97 : vector<1x16x128xf32> to vector<16x128xf32>
      %99 = vector.shape_cast %96 : vector<16x128xf32> to vector<1x16x128xf32>
      tpu.vector_store %arg7[%c3_57, %c0_58, %c0_59], %99 {strides = array<i32>} : memref<4x16x128xf32, #tpu.memory_space<vmem>>, vector<1x16x128xf32>,
    } else {
    }
    return
  }
  func.func @transform_0(%arg0: i32, %arg1: i32) -> (i32, i32) {
    %c0_i32 = arith.constant 0 : i32
    return %arg0, %arg1 : i32, i32
  }
  func.func @transform_1(%arg0: i32, %arg1: i32) -> (i32, i32) {
    %c0_i32 = arith.constant 0 : i32
    %c0_i32_0 = arith.constant 0 : i32
    return %arg1, %c0_i32 : i32, i32
  }
  func.func @transform_2(%arg0: i32, %arg1: i32) -> (i32, i32) {
    %c0_i32 = arith.constant 0 : i32
    %c0_i32_0 = arith.constant 0 : i32
    %c0_i32_1 = arith.constant 0 : i32
    return %c0_i32, %c0_i32_0 : i32, i32
  }
  func.func @transform_3(%arg0: i32, %arg1: i32) -> (i32, i32, i32) {
    %c0_i32 = arith.constant 0 : i32
    %c0_i32_0 = arith.constant 0 : i32
    %c0_i32_1 = arith.constant 0 : i32
    %c0_i32_2 = arith.constant 0 : i32
    return %c0_i32, %c0_i32_0, %c0_i32_1 : i32, i32, i32
  }
  func.func @transform_4(%arg0: i32, %arg1: i32) -> (i32, i32, i32) {
    %c0_i32 = arith.constant 0 : i32
    %c0_i32_0 = arith.constant 0 : i32
    %c0_i32_1 = arith.constant 0 : i32
    %c0_i32_2 = arith.constant 0 : i32
    return %c0_i32, %c0_i32_0, %c0_i32_1 : i32, i32, i32
  }
  func.func @transform_5(%arg0: i32, %arg1: i32) -> (i32, i32, i32) {
    %c0_i32 = arith.constant 0 : i32
    %c0_i32_0 = arith.constant 0 : i32
    %c0_i32_1 = arith.constant 0 : i32
    return %c0_i32, %arg0, %c0_i32_0 : i32, i32, i32
  }
}

</mosaic_0001>

<llo_original>
// kernel: tpu_custom_call.1
$region0: #{tpu_custom_call.1}
  #allocation0 [shape = 'u32[]', space=smem, size = 0x4, offset = 0x4, fixed_abs, tag = 'smem constant byte address 0x4 - core index']
  #allocation1 [shape = 'u32[144,128]{1,0:T(1,128)}', space=vmem, size = 0x12000, scoped, tag = 'internal scratch']
  #allocation2 [shape = 'f32[16,64]{1,0:T(8,128)}', space=vmem, size = 0x2000, scoped, tag = 'scratch operand']
  #allocation5 [shape = 's32[]', space=sflag, size = 0x4, offset = 0, fixed_abs, tag = 'sflag constant byte address 0x0 - dummy sync flag']
  %s0 = inlined_call_operand.vmem [shape: f32[2,1024], index: 0, kind: input, shape index: {}]
  %s1 = inlined_call_operand.vmem [shape: bf16[1024,64], index: 1, kind: input, shape index: {}]
  %s2 = inlined_call_operand.vmem [shape: f32[1,64], index: 2, kind: input, shape index: {}]
  %s3 = inlined_call_operand.vmem [shape: bf16[4,64,128], index: 3, kind: input, shape index: {}]
  %s4 = inlined_call_operand.vmem [shape: f32[4,1,128], index: 4, kind: input, shape index: {}]
  %s5 = inlined_call_operand.hbm [shape: f32[4,2,128], index: 5, kind: output, shape index: {}]
  %s6 = sld [smem:[#allocation0]]
  $region38: #{tpu_custom_call.1} parent=0
    _
  %s8 = ssub.s32 1, %s6
  %s9 = scalar_select 0, %s8, %s6
  $region1: #{tpu_custom_call.1} parent=0
    #allocation3 [shape = 'u8[32768]{0}', space=vmem, size = 0x8000, scoped, tag = 'output window, operand 0, single buffered']
    #allocation4 [shape = 's32[1]{0}', space=sflag, size = 0x4, scoped, tag = 'scoped memory for tpu_custom_call.1']
    %10 = vsyncpa [#allocation4], 0
    // Predicated region
    $region2: #{tpu_custom_call.1} parent=1 // pred_check
      _
    $region3: #{tpu_custom_call.1} parent=1 // pred_check_branch
      %12 = sbr.rel (0) target = $region5
    $region4: #{tpu_custom_call.1} parent=1 // pred_region
      _
    $region5: #{tpu_custom_call.1} parent=1 // pred_fallthru
      _
    // Predicated region
    $region6: #{tpu_custom_call.1} parent=1 // pred_check
      _
    $region7: #{tpu_custom_call.1} parent=1 // pred_check_branch
      %14 = sbr.rel (0) target = $region9
    $region8: #{tpu_custom_call.1} parent=1 // pred_region
      _
    $region9: #{tpu_custom_call.1} parent=1 // pred_fallthru
      _
    // Predicated region
    $region10: #{tpu_custom_call.1} parent=1 // pred_check
      _
    $region11: #{tpu_custom_call.1} parent=1 // pred_check_branch
      %16 = sbr.rel (0) target = $region13
    $region12: #{tpu_custom_call.1} parent=1 // pred_region
      _
    $region13: #{tpu_custom_call.1} parent=1 // pred_fallthru
      _
    // Predicated region
    $region14: #{tpu_custom_call.1} parent=1 // pred_check
      _
    $region15: #{tpu_custom_call.1} parent=1 // pred_check_branch
      %18 = sbr.rel (0) target = $region17
    $region16: #{tpu_custom_call.1} parent=1 // pred_region
      _
    $region17: #{tpu_custom_call.1} parent=1 // pred_fallthru
      _
    // Predicated region
    $region18: #{tpu_custom_call.1} parent=1 // pred_check
      _
    $region19: #{tpu_custom_call.1} parent=1 // pred_check_branch
      %20 = sbr.rel (0) target = $region21
    $region20: #{tpu_custom_call.1} parent=1 // pred_region
      _
    $region21: #{tpu_custom_call.1} parent=1 // pred_fallthru
      _
    %p22 = scmp.eq.s32.totalorder 0, 0
    // Predicated region
    $region22: #{tpu_custom_call.1} parent=1 // pred_check
      %p23 = pneg %p22
    $region23: #{tpu_custom_call.1} parent=1 // pred_check_branch
      %25 = sbr.rel (%p23) target = $region25
    $region24: #{tpu_custom_call.1} parent=1 // pred_region
      %vm26 = vcmask 523264
      %27 = vst.msk [vmem:[#allocation2] sm:$0xff] %vm26, 0.0
      %28 = vst.msk [vmem:[#allocation2 + $0x8] sm:$0xff] %vm26, 0.0
    $region25: #{tpu_custom_call.1} parent=1 // pred_fallthru
      _
    %v29 = vld [vmem:[%s0] sm:$0xff]
    %v30 = vld [vmem:[%s0 + $0x8] sm:$0xff]
    %v31 = vld [vmem:[%s0 + $0x10] sm:$0xff]
    %v32 = vld [vmem:[%s0 + $0x18] sm:$0xff]
    %v33 = vld [vmem:[%s0 + $0x20] sm:$0xff]
    %v34 = vld [vmem:[%s0 + $0x28] sm:$0xff]
    %v35 = vld [vmem:[%s0 + $0x30] sm:$0xff]
    %v36 = vld [vmem:[%s0 + $0x38] sm:$0xff]
    %v37 = vld [vmem:[%s0 + $0x40] sm:$0xff]
    %v38 = vld [vmem:[%s0 + $0x48] sm:$0xff]
    %v39 = vld [vmem:[%s0 + $0x50] sm:$0xff]
    %v40 = vld [vmem:[%s0 + $0x58] sm:$0xff]
    %v41 = vld [vmem:[%s0 + $0x60] sm:$0xff]
    %v42 = vld [vmem:[%s0 + $0x68] sm:$0xff]
    %v43 = vld [vmem:[%s0 + $0x70] sm:$0xff]
    %v44 = vld [vmem:[%s0 + $0x78] sm:$0xff]
    %v45 = vld [vmem:[#allocation2] sm:$0xff]
    %v46 = vld [vmem:[#allocation2 + $0x8] sm:$0xff]
    %v63 = vcombine.low %v29, %v31
    %v64 = vcombine.high %v29, %v31
    %v65 = vcombine.low %v33, %v35
    %v66 = vcombine.high %v33, %v35
    %v68 = vunpack.c.l.s4 1983009808
    %v69 = vunpack.c.0.s8 %v68
    %v70 = vlaneseq
    %v71 = vshrl.u32 %v70, 7
    %v72 = vsub.s32 %v69, %v71
    %v73 = vrot.slane %v63, %v72
    %v75 = vunpack.c.l.s4 1983009808
    %v76 = vunpack.c.0.s8 %v75
    %v77 = vlaneseq
    %v78 = vshrl.u32 %v77, 7
    %v79 = vsub.s32 %v76, %v78
    %v80 = vrot.slane %v64, %v79
    %v82 = vunpack.c.l.s4 1983009808
    %v83 = vunpack.c.0.s8 %v82
    %v84 = vlaneseq
    %v85 = vshrl.u32 %v84, 7
    %v86 = vsub.s32 %v83, %v85
    %v87 = vrot.slane %v65, %v86
    %v89 = vunpack.c.l.s4 1983009808
    %v90 = vunpack.c.0.s8 %v89
    %v91 = vlaneseq
    %v92 = vshrl.u32 %v91, 7
    %v93 = vsub.s32 %v90, %v92
    %v94 = vrot.slane %v66, %v93
    %v95 = vcombine.low %v73, %v87
    %v96 = vcombine.high %v73, %v87
    %v97 = vcombine.low %v80, %v94
    %v98 = vcombine.high %v80, %v94
    %v99 = vcombine.low %v30, %v32
    %v100 = vcombine.high %v30, %v32
    %v101 = vcombine.low %v34, %v36
    %v102 = vcombine.high %v34, %v36
    %v104 = vunpack.c.l.s4 1983009808
    %v105 = vunpack.c.0.s8 %v104
    %v106 = vlaneseq
    %v107 = vshrl.u32 %v106, 7
    %v108 = vsub.s32 %v105, %v107
    %v109 = vrot.slane %v99, %v108
    %v111 = vunpack.c.l.s4 1983009808
    %v112 = vunpack.c.0.s8 %v111
    %v113 = vlaneseq
    %v114 = vshrl.u32 %v113, 7
    %v115 = vsub.s32 %v112, %v114
    %v116 = vrot.slane %v100, %v115
    %v118 = vunpack.c.l.s4 1983009808
    %v119 = vunpack.c.0.s8 %v118
    %v120 = vlaneseq
    %v121 = vshrl.u32 %v120, 7
    %v122 = vsub.s32 %v119, %v121
    %v123 = vrot.slane %v101, %v122
    %v125 = vunpack.c.l.s4 1983009808
    %v126 = vunpack.c.0.s8 %v125
    %v127 = vlaneseq
    %v128 = vshrl.u32 %v127, 7
    %v129 = vsub.s32 %v126, %v128
    %v130 = vrot.slane %v102, %v129
    %v131 = vcombine.low %v109, %v123
    %v132 = vcombine.high %v109, %v123
    %v133 = vcombine.low %v116, %v130
    %v134 = vcombine.high %v116, %v130
    %v135 = vcombine.low %v37, %v39
    %v136 = vcombine.high %v37, %v39
    %v137 = vcombine.low %v41, %v43
    %v138 = vcombine.high %v41, %v43
    %v140 = vunpack.c.l.s4 1983009808
    %v141 = vunpack.c.0.s8 %v140
    %v142 = vlaneseq
    %v143 = vshrl.u32 %v142, 7
    %v144 = vsub.s32 %v141, %v143
    %v145 = vrot.slane %v135, %v144
    %v147 = vunpack.c.l.s4 1983009808
    %v148 = vunpack.c.0.s8 %v147
    %v149 = vlaneseq
    %v150 = vshrl.u32 %v149, 7
    %v151 = vsub.s32 %v148, %v150
    %v152 = vrot.slane %v136, %v151
    %v154 = vunpack.c.l.s4 1983009808
    %v155 = vunpack.c.0.s8 %v154
    %v156 = vlaneseq
    %v157 = vshrl.u32 %v156, 7
    %v158 = vsub.s32 %v155, %v157
    %v159 = vrot.slane %v137, %v158
    %v161 = vunpack.c.l.s4 1983009808
    %v162 = vunpack.c.0.s8 %v161
    %v163 = vlaneseq
    %v164 = vshrl.u32 %v163, 7
    %v165 = vsub.s32 %v162, %v164
    %v166 = vrot.slane %v138, %v165
    %v167 = vcombine.low %v145, %v159
    %v168 = vcombine.high %v145, %v159
    %v169 = vcombine.low %v152, %v166
    %v170 = vcombine.high %v152, %v166
    %v171 = vcombine.low %v38, %v40
    %v172 = vcombine.high %v38, %v40
    %v173 = vcombine.low %v42, %v44
    %v174 = vcombine.high %v42, %v44
    %v176 = vunpack.c.l.s4 1983009808
    %v177 = vunpack.c.0.s8 %v176
    %v178 = vlaneseq
    %v179 = vshrl.u32 %v178, 7
    %v180 = vsub.s32 %v177, %v179
    %v181 = vrot.slane %v171, %v180
    %v183 = vunpack.c.l.s4 1983009808
    %v184 = vunpack.c.0.s8 %v183
    %v185 = vlaneseq
    %v186 = vshrl.u32 %v185, 7
    %v187 = vsub.s32 %v184, %v186
    %v188 = vrot.slane %v172, %v187
    %v190 = vunpack.c.l.s4 1983009808
    %v191 = vunpack.c.0.s8 %v190
    %v192 = vlaneseq
    %v193 = vshrl.u32 %v192, 7
    %v194 = vsub.s32 %v191, %v193
    %v195 = vrot.slane %v173, %v194
    %v197 = vunpack.c.l.s4 1983009808
    %v198 = vunpack.c.0.s8 %v197
    %v199 = vlaneseq
    %v200 = vshrl.u32 %v199, 7
    %v201 = vsub.s32 %v198, %v200
    %v202 = vrot.slane %v174, %v201
    %v203 = vcombine.low %v181, %v195
    %v204 = vcombine.high %v181, %v195
    %v205 = vcombine.low %v188, %v202
    %v206 = vcombine.high %v188, %v202
    %v223 = vpack.c.bf16 %v167, %v95
    %v224 = vpack.c.bf16 %v168, %v96
    %v225 = vpack.c.bf16 %v169, %v97
    %v226 = vpack.c.bf16 %v170, %v98
    %v227 = vpack.c.bf16 %v203, %v131
    %v228 = vpack.c.bf16 %v204, %v132
    %v229 = vpack.c.bf16 %v205, %v133
    %v230 = vpack.c.bf16 %v206, %v134
    %v231 = vld [vmem:[%s1] sm:$0xf]
    %v232 = vld [vmem:[%s1 + $0x4] sm:$0xf]
    %v233 = vld [vmem:[%s1 + $0x8] sm:$0xf]
    %v234 = vld [vmem:[%s1 + $0xc] sm:$0xf]
    %v235 = vld [vmem:[%s1 + $0x10] sm:$0xf]
    %v236 = vld [vmem:[%s1 + $0x14] sm:$0xf]
    %v237 = vld [vmem:[%s1 + $0x18] sm:$0xf]
    %v238 = vld [vmem:[%s1 + $0x1c] sm:$0xf]
    %v239 = vld [vmem:[%s1 + $0x20] sm:$0xf]
    %v240 = vld [vmem:[%s1 + $0x24] sm:$0xf]
    %v241 = vld [vmem:[%s1 + $0x28] sm:$0xf]
    %v242 = vld [vmem:[%s1 + $0x2c] sm:$0xf]
    %v243 = vld [vmem:[%s1 + $0x30] sm:$0xf]
    %v244 = vld [vmem:[%s1 + $0x34] sm:$0xf]
    %v245 = vld [vmem:[%s1 + $0x38] sm:$0xf]
    %v246 = vld [vmem:[%s1 + $0x3c] sm:$0xf]
    %v247 = vld [vmem:[%s1 + $0x40] sm:$0xf]
    %v248 = vld [vmem:[%s1 + $0x44] sm:$0xf]
    %v249 = vld [vmem:[%s1 + $0x48] sm:$0xf]
    %v250 = vld [vmem:[%s1 + $0x4c] sm:$0xf]
    %v251 = vld [vmem:[%s1 + $0x50] sm:$0xf]
    %v252 = vld [vmem:[%s1 + $0x54] sm:$0xf]
    %v253 = vld [vmem:[%s1 + $0x58] sm:$0xf]
    %v254 = vld [vmem:[%s1 + $0x5c] sm:$0xf]
    %v255 = vld [vmem:[%s1 + $0x60] sm:$0xf]
    %v256 = vld [vmem:[%s1 + $0x64] sm:$0xf]
    %v257 = vld [vmem:[%s1 + $0x68] sm:$0xf]
    %v258 = vld [vmem:[%s1 + $0x6c] sm:$0xf]
    %v259 = vld [vmem:[%s1 + $0x70] sm:$0xf]
    %v260 = vld [vmem:[%s1 + $0x74] sm:$0xf]
    %v261 = vld [vmem:[%s1 + $0x78] sm:$0xf]
    %v262 = vld [vmem:[%s1 + $0x7c] sm:$0xf]
    %v263 = vld [vmem:[%s1 + $0x80] sm:$0xf]
    %v264 = vld [vmem:[%s1 + $0x84] sm:$0xf]
    %v265 = vld [vmem:[%s1 + $0x88] sm:$0xf]
    %v266 = vld [vmem:[%s1 + $0x8c] sm:$0xf]
    %v267 = vld [vmem:[%s1 + $0x90] sm:$0xf]
    %v268 = vld [vmem:[%s1 + $0x94] sm:$0xf]
    %v269 = vld [vmem:[%s1 + $0x98] sm:$0xf]
    %v270 = vld [vmem:[%s1 + $0x9c] sm:$0xf]
    %v271 = vld [vmem:[%s1 + $0xa0] sm:$0xf]
    %v272 = vld [vmem:[%s1 + $0xa4] sm:$0xf]
    %v273 = vld [vmem:[%s1 + $0xa8] sm:$0xf]
    %v274 = vld [vmem:[%s1 + $0xac] sm:$0xf]
    %v275 = vld [vmem:[%s1 + $0xb0] sm:$0xf]
    %v276 = vld [vmem:[%s1 + $0xb4] sm:$0xf]
    %v277 = vld [vmem:[%s1 + $0xb8] sm:$0xf]
    %v278 = vld [vmem:[%s1 + $0xbc] sm:$0xf]
    %v279 = vld [vmem:[%s1 + $0xc0] sm:$0xf]
    %v280 = vld [vmem:[%s1 + $0xc4] sm:$0xf]
    %v281 = vld [vmem:[%s1 + $0xc8] sm:$0xf]
    %v282 = vld [vmem:[%s1 + $0xcc] sm:$0xf]
    %v283 = vld [vmem:[%s1 + $0xd0] sm:$0xf]
    %v284 = vld [vmem:[%s1 + $0xd4] sm:$0xf]
    %v285 = vld [vmem:[%s1 + $0xd8] sm:$0xf]
    %v286 = vld [vmem:[%s1 + $0xdc] sm:$0xf]
    %v287 = vld [vmem:[%s1 + $0xe0] sm:$0xf]
    %v288 = vld [vmem:[%s1 + $0xe4] sm:$0xf]
    %v289 = vld [vmem:[%s1 + $0xe8] sm:$0xf]
    %v290 = vld [vmem:[%s1 + $0xec] sm:$0xf]
    %v291 = vld [vmem:[%s1 + $0xf0] sm:$0xf]
    %v292 = vld [vmem:[%s1 + $0xf4] sm:$0xf]
    %v293 = vld [vmem:[%s1 + $0xf8] sm:$0xf]
    %v294 = vld [vmem:[%s1 + $0xfc] sm:$0xf]
    %v295 = vld [vmem:[%s1 + $0x100] sm:$0xf]
    %v296 = vld [vmem:[%s1 + $0x104] sm:$0xf]
    %v297 = vld [vmem:[%s1 + $0x108] sm:$0xf]
    %v298 = vld [vmem:[%s1 + $0x10c] sm:$0xf]
    %v299 = vld [vmem:[%s1 + $0x110] sm:$0xf]
    %v300 = vld [vmem:[%s1 + $0x114] sm:$0xf]
    %v301 = vld [vmem:[%s1 + $0x118] sm:$0xf]
    %v302 = vld [vmem:[%s1 + $0x11c] sm:$0xf]
    %v303 = vld [vmem:[%s1 + $0x120] sm:$0xf]
    %v304 = vld [vmem:[%s1 + $0x124] sm:$0xf]
    %v305 = vld [vmem:[%s1 + $0x128] sm:$0xf]
    %v306 = vld [vmem:[%s1 + $0x12c] sm:$0xf]
    %v307 = vld [vmem:[%s1 + $0x130] sm:$0xf]
    %v308 = vld [vmem:[%s1 + $0x134] sm:$0xf]
    %v309 = vld [vmem:[%s1 + $0x138] sm:$0xf]
    %v310 = vld [vmem:[%s1 + $0x13c] sm:$0xf]
    %v311 = vld [vmem:[%s1 + $0x140] sm:$0xf]
    %v312 = vld [vmem:[%s1 + $0x144] sm:$0xf]
    %v313 = vld [vmem:[%s1 + $0x148] sm:$0xf]
    %v314 = vld [vmem:[%s1 + $0x14c] sm:$0xf]
    %v315 = vld [vmem:[%s1 + $0x150] sm:$0xf]
    %v316 = vld [vmem:[%s1 + $0x154] sm:$0xf]
    %v317 = vld [vmem:[%s1 + $0x158] sm:$0xf]
    %v318 = vld [vmem:[%s1 + $0x15c] sm:$0xf]
    %v319 = vld [vmem:[%s1 + $0x160] sm:$0xf]
    %v320 = vld [vmem:[%s1 + $0x164] sm:$0xf]
    %v321 = vld [vmem:[%s1 + $0x168] sm:$0xf]
    %v322 = vld [vmem:[%s1 + $0x16c] sm:$0xf]
    %v323 = vld [vmem:[%s1 + $0x170] sm:$0xf]
    %v324 = vld [vmem:[%s1 + $0x174] sm:$0xf]
    %v325 = vld [vmem:[%s1 + $0x178] sm:$0xf]
    %v326 = vld [vmem:[%s1 + $0x17c] sm:$0xf]
    %v327 = vld [vmem:[%s1 + $0x180] sm:$0xf]
    %v328 = vld [vmem:[%s1 + $0x184] sm:$0xf]
    %v329 = vld [vmem:[%s1 + $0x188] sm:$0xf]
    %v330 = vld [vmem:[%s1 + $0x18c] sm:$0xf]
    %v331 = vld [vmem:[%s1 + $0x190] sm:$0xf]
    %v332 = vld [vmem:[%s1 + $0x194] sm:$0xf]
    %v333 = vld [vmem:[%s1 + $0x198] sm:$0xf]
    %v334 = vld [vmem:[%s1 + $0x19c] sm:$0xf]
    %v335 = vld [vmem:[%s1 + $0x1a0] sm:$0xf]
    %v336 = vld [vmem:[%s1 + $0x1a4] sm:$0xf]
    %v337 = vld [vmem:[%s1 + $0x1a8] sm:$0xf]
    %v338 = vld [vmem:[%s1 + $0x1ac] sm:$0xf]
    %v339 = vld [vmem:[%s1 + $0x1b0] sm:$0xf]
    %v340 = vld [vmem:[%s1 + $0x1b4] sm:$0xf]
    %v341 = vld [vmem:[%s1 + $0x1b8] sm:$0xf]
    %v342 = vld [vmem:[%s1 + $0x1bc] sm:$0xf]
    %v343 = vld [vmem:[%s1 + $0x1c0] sm:$0xf]
    %v344 = vld [vmem:[%s1 + $0x1c4] sm:$0xf]
    %v345 = vld [vmem:[%s1 + $0x1c8] sm:$0xf]
    %v346 = vld [vmem:[%s1 + $0x1cc] sm:$0xf]
    %v347 = vld [vmem:[%s1 + $0x1d0] sm:$0xf]
    %v348 = vld [vmem:[%s1 + $0x1d4] sm:$0xf]
    %v349 = vld [vmem:[%s1 + $0x1d8] sm:$0xf]
    %v350 = vld [vmem:[%s1 + $0x1dc] sm:$0xf]
    %v351 = vld [vmem:[%s1 + $0x1e0] sm:$0xf]
    %v352 = vld [vmem:[%s1 + $0x1e4] sm:$0xf]
    %v353 = vld [vmem:[%s1 + $0x1e8] sm:$0xf]
    %v354 = vld [vmem:[%s1 + $0x1ec] sm:$0xf]
    %v355 = vld [vmem:[%s1 + $0x1f0] sm:$0xf]
    %v356 = vld [vmem:[%s1 + $0x1f4] sm:$0xf]
    %v357 = vld [vmem:[%s1 + $0x1f8] sm:$0xf]
    %v358 = vld [vmem:[%s1 + $0x1fc] sm:$0xf]
    %v487 = vunpack.c.l.b16 %v231
    %v488 = vunpack.c.l.b16 %v232
    %v489 = vunpack.c.l.b16 %v233
    %v490 = vunpack.c.l.b16 %v234
    %v491 = vunpack.c.l.b16 %v235
    %v492 = vunpack.c.l.b16 %v236
    %v493 = vunpack.c.l.b16 %v237
    %v494 = vunpack.c.l.b16 %v238
    %v495 = vunpack.c.l.b16 %v239
    %v496 = vunpack.c.l.b16 %v240
    %v497 = vunpack.c.l.b16 %v241
    %v498 = vunpack.c.l.b16 %v242
    %v499 = vunpack.c.l.b16 %v243
    %v500 = vunpack.c.l.b16 %v244
    %v501 = vunpack.c.l.b16 %v245
    %v502 = vunpack.c.l.b16 %v246
    %v503 = vunpack.c.l.b16 %v247
    %v504 = vunpack.c.l.b16 %v248
    %v505 = vunpack.c.l.b16 %v249
    %v506 = vunpack.c.l.b16 %v250
    %v507 = vunpack.c.l.b16 %v251
    %v508 = vunpack.c.l.b16 %v252
    %v509 = vunpack.c.l.b16 %v253
    %v510 = vunpack.c.l.b16 %v254
    %v511 = vunpack.c.l.b16 %v255
    %v512 = vunpack.c.l.b16 %v256
    %v513 = vunpack.c.l.b16 %v257
    %v514 = vunpack.c.l.b16 %v258
    %v515 = vunpack.c.l.b16 %v259
    %v516 = vunpack.c.l.b16 %v260
    %v517 = vunpack.c.l.b16 %v261
    %v518 = vunpack.c.l.b16 %v262
    %v519 = vunpack.c.l.b16 %v263
    %v520 = vunpack.c.l.b16 %v264
    %v521 = vunpack.c.l.b16 %v265
    %v522 = vunpack.c.l.b16 %v266
    %v523 = vunpack.c.l.b16 %v267
    %v524 = vunpack.c.l.b16 %v268
    %v525 = vunpack.c.l.b16 %v269
    %v526 = vunpack.c.l.b16 %v270
    %v527 = vunpack.c.l.b16 %v271
    %v528 = vunpack.c.l.b16 %v272
    %v529 = vunpack.c.l.b16 %v273
    %v530 = vunpack.c.l.b16 %v274
    %v531 = vunpack.c.l.b16 %v275
    %v532 = vunpack.c.l.b16 %v276
    %v533 = vunpack.c.l.b16 %v277
    %v534 = vunpack.c.l.b16 %v278
    %v535 = vunpack.c.l.b16 %v279
    %v536 = vunpack.c.l.b16 %v280
    %v537 = vunpack.c.l.b16 %v281
    %v538 = vunpack.c.l.b16 %v282
    %v539 = vunpack.c.l.b16 %v283
    %v540 = vunpack.c.l.b16 %v284
    %v541 = vunpack.c.l.b16 %v285
    %v542 = vunpack.c.l.b16 %v286
    %v543 = vunpack.c.l.b16 %v287
    %v544 = vunpack.c.l.b16 %v288
    %v545 = vunpack.c.l.b16 %v289
    %v546 = vunpack.c.l.b16 %v290
    %v547 = vunpack.c.l.b16 %v291
    %v548 = vunpack.c.l.b16 %v292
    %v549 = vunpack.c.l.b16 %v293
    %v550 = vunpack.c.l.b16 %v294
    %v551 = vunpack.c.l.b16 %v295
    %v552 = vunpack.c.l.b16 %v296
    %v553 = vunpack.c.l.b16 %v297
    %v554 = vunpack.c.l.b16 %v298
    %v555 = vunpack.c.l.b16 %v299
    %v556 = vunpack.c.l.b16 %v300
    %v557 = vunpack.c.l.b16 %v301
    %v558 = vunpack.c.l.b16 %v302
    %v559 = vunpack.c.l.b16 %v303
    %v560 = vunpack.c.l.b16 %v304
    %v561 = vunpack.c.l.b16 %v305
    %v562 = vunpack.c.l.b16 %v306
    %v563 = vunpack.c.l.b16 %v307
    %v564 = vunpack.c.l.b16 %v308
    %v565 = vunpack.c.l.b16 %v309
    %v566 = vunpack.c.l.b16 %v310
    %v567 = vunpack.c.l.b16 %v311
    %v568 = vunpack.c.l.b16 %v312
    %v569 = vunpack.c.l.b16 %v313
    %v570 = vunpack.c.l.b16 %v314
    %v571 = vunpack.c.l.b16 %v315
    %v572 = vunpack.c.l.b16 %v316
    %v573 = vunpack.c.l.b16 %v317
    %v574 = vunpack.c.l.b16 %v318
    %v575 = vunpack.c.l.b16 %v319
    %v576 = vunpack.c.l.b16 %v320
    %v577 = vunpack.c.l.b16 %v321
    %v578 = vunpack.c.l.b16 %v322
    %v579 = vunpack.c.l.b16 %v323
    %v580 = vunpack.c.l.b16 %v324
    %v581 = vunpack.c.l.b16 %v325
    %v582 = vunpack.c.l.b16 %v326
    %v583 = vunpack.c.l.b16 %v327
    %v584 = vunpack.c.l.b16 %v328
    %v585 = vunpack.c.l.b16 %v329
    %v586 = vunpack.c.l.b16 %v330
    %v587 = vunpack.c.l.b16 %v331
    %v588 = vunpack.c.l.b16 %v332
    %v589 = vunpack.c.l.b16 %v333
    %v590 = vunpack.c.l.b16 %v334
    %v591 = vunpack.c.l.b16 %v335
    %v592 = vunpack.c.l.b16 %v336
    %v593 = vunpack.c.l.b16 %v337
    %v594 = vunpack.c.l.b16 %v338
    %v595 = vunpack.c.l.b16 %v339
    %v596 = vunpack.c.l.b16 %v340
    %v597 = vunpack.c.l.b16 %v341
    %v598 = vunpack.c.l.b16 %v342
    %v599 = vunpack.c.l.b16 %v343
    %v600 = vunpack.c.l.b16 %v344
    %v601 = vunpack.c.l.b16 %v345
    %v602 = vunpack.c.l.b16 %v346
    %v603 = vunpack.c.l.b16 %v347
    %v604 = vunpack.c.l.b16 %v348
    %v605 = vunpack.c.l.b16 %v349
    %v606 = vunpack.c.l.b16 %v350
    %v607 = vunpack.c.l.b16 %v351
    %v608 = vunpack.c.l.b16 %v352
    %v609 = vunpack.c.l.b16 %v353
    %v610 = vunpack.c.l.b16 %v354
    %v611 = vunpack.c.l.b16 %v355
    %v612 = vunpack.c.l.b16 %v356
    %v613 = vunpack.c.l.b16 %v357
    %v614 = vunpack.c.l.b16 %v358
    %v615 = vpack.c.b16 %v488, %v487
    %v616 = vpack.c.b16 %v490, %v489
    %v617 = vpack.c.b16 %v492, %v491
    %v618 = vpack.c.b16 %v494, %v493
    %v619 = vpack.c.b16 %v496, %v495
    %v620 = vpack.c.b16 %v498, %v497
    %v621 = vpack.c.b16 %v500, %v499
    %v622 = vpack.c.b16 %v502, %v501
    %v623 = vpack.c.b16 %v504, %v503
    %v624 = vpack.c.b16 %v506, %v505
    %v625 = vpack.c.b16 %v508, %v507
    %v626 = vpack.c.b16 %v510, %v509
    %v627 = vpack.c.b16 %v512, %v511
    %v628 = vpack.c.b16 %v514, %v513
    %v629 = vpack.c.b16 %v516, %v515
    %v630 = vpack.c.b16 %v518, %v517
    %v631 = vpack.c.b16 %v520, %v519
    %v632 = vpack.c.b16 %v522, %v521
    %v633 = vpack.c.b16 %v524, %v523
    %v634 = vpack.c.b16 %v526, %v525
    %v635 = vpack.c.b16 %v528, %v527
    %v636 = vpack.c.b16 %v530, %v529
    %v637 = vpack.c.b16 %v532, %v531
    %v638 = vpack.c.b16 %v534, %v533
    %v639 = vpack.c.b16 %v536, %v535
    %v640 = vpack.c.b16 %v538, %v537
    %v641 = vpack.c.b16 %v540, %v539
    %v642 = vpack.c.b16 %v542, %v541
    %v643 = vpack.c.b16 %v544, %v543
    %v644 = vpack.c.b16 %v546, %v545
    %v645 = vpack.c.b16 %v548, %v547
    %v646 = vpack.c.b16 %v550, %v549
    %v647 = vpack.c.b16 %v552, %v551
    %v648 = vpack.c.b16 %v554, %v553
    %v649 = vpack.c.b16 %v556, %v555
    %v650 = vpack.c.b16 %v558, %v557
    %v651 = vpack.c.b16 %v560, %v559
    %v652 = vpack.c.b16 %v562, %v561
    %v653 = vpack.c.b16 %v564, %v563
    %v654 = vpack.c.b16 %v566, %v565
    %v655 = vpack.c.b16 %v568, %v567
    %v656 = vpack.c.b16 %v570, %v569
    %v657 = vpack.c.b16 %v572, %v571
    %v658 = vpack.c.b16 %v574, %v573
    %v659 = vpack.c.b16 %v576, %v575
    %v660 = vpack.c.b16 %v578, %v577
    %v661 = vpack.c.b16 %v580, %v579
    %v662 = vpack.c.b16 %v582, %v581
    %v663 = vpack.c.b16 %v584, %v583
    %v664 = vpack.c.b16 %v586, %v585
    %v665 = vpack.c.b16 %v588, %v587
    %v666 = vpack.c.b16 %v590, %v589
    %v667 = vpack.c.b16 %v592, %v591
    %v668 = vpack.c.b16 %v594, %v593
    %v669 = vpack.c.b16 %v596, %v595
    %v670 = vpack.c.b16 %v598, %v597
    %v671 = vpack.c.b16 %v600, %v599
    %v672 = vpack.c.b16 %v602, %v601
    %v673 = vpack.c.b16 %v604, %v603
    %v674 = vpack.c.b16 %v606, %v605
    %v675 = vpack.c.b16 %v608, %v607
    %v676 = vpack.c.b16 %v610, %v609
    %v677 = vpack.c.b16 %v612, %v611
    %v678 = vpack.c.b16 %v614, %v613
    %743 = vmatprep.subr.bf16.mxu0 0
    %744 = vmatpush1.bf16.msra.mxu0 %v615
    %745 = vmatprep.subr.bf16.mxu0 0
    %746 = vmatpush1.bf16.msra.mxu0 %v616
    %747 = vmatprep.subr.bf16.mxu0 0
    %748 = vmatpush1.bf16.msra.mxu0 %v617
    %749 = vmatprep.subr.bf16.mxu0 0
    %750 = vmatpush1.bf16.msra.mxu0 %v618
    %751 = vmatprep.subr.bf16.mxu0 0
    %752 = vmatpush1.bf16.msra.mxu0 %v619
    %753 = vmatprep.subr.bf16.mxu0 0
    %754 = vmatpush1.bf16.msra.mxu0 %v620
    %755 = vmatprep.subr.bf16.mxu0 0
    %756 = vmatpush1.bf16.msra.mxu0 %v621
    %757 = vmatprep.subr.bf16.mxu0 0
    %758 = vmatpush1.bf16.msra.mxu0 %v622
    %759 = vmatprep.subr.bf16.mxu0 0
    %760 = vmatpush1.bf16.msra.mxu0 %v623
    %761 = vmatprep.subr.bf16.mxu0 0
    %762 = vmatpush1.bf16.msra.mxu0 %v624
    %763 = vmatprep.subr.bf16.mxu0 0
    %764 = vmatpush1.bf16.msra.mxu0 %v625
    %765 = vmatprep.subr.bf16.mxu0 0
    %766 = vmatpush1.bf16.msra.mxu0 %v626
    %767 = vmatprep.subr.bf16.mxu0 0
    %768 = vmatpush1.bf16.msra.mxu0 %v627
    %769 = vmatprep.subr.bf16.mxu0 0
    %770 = vmatpush1.bf16.msra.mxu0 %v628
    %771 = vmatprep.subr.bf16.mxu0 0
    %772 = vmatpush1.bf16.msra.mxu0 %v629
    %773 = vmatprep.subr.bf16.mxu0 0
    %774 = vmatpush1.bf16.msra.mxu0 %v630
    %775 = vmatprep.mubr.bf16.mxu0 %v224
    %776 = vmatmul.mubr.bf16.gmra.mrb[0].mxu0 %v223
    %v777 = vpop.f32.mrb[0].mxu0
    %v778 = vadd.f32 0.0, %v777
    %v779 = vpop.f32.mrb[0].mxu0
    %v780 = vpop.f32.mrb[0].mxu0
    %v781 = vadd.f32 0.0, %v780
    %v782 = vpop.f32.mrb[0].mxu0
    %783 = vdwg.mxu0
    %784 = vmatprep.subr.bf16.mxu0 0
    %785 = vmatpush1.bf16.msra.mxu0 %v631
    %786 = vmatprep.subr.bf16.mxu0 0
    %787 = vmatpush1.bf16.msra.mxu0 %v632
    %788 = vmatprep.subr.bf16.mxu0 0
    %789 = vmatpush1.bf16.msra.mxu0 %v633
    %790 = vmatprep.subr.bf16.mxu0 0
    %791 = vmatpush1.bf16.msra.mxu0 %v634
    %792 = vmatprep.subr.bf16.mxu0 0
    %793 = vmatpush1.bf16.msra.mxu0 %v635
    %794 = vmatprep.subr.bf16.mxu0 0
    %795 = vmatpush1.bf16.msra.mxu0 %v636
    %796 = vmatprep.subr.bf16.mxu0 0
    %797 = vmatpush1.bf16.msra.mxu0 %v637
    %798 = vmatprep.subr.bf16.mxu0 0
    %799 = vmatpush1.bf16.msra.mxu0 %v638
    %800 = vmatprep.subr.bf16.mxu0 0
    %801 = vmatpush1.bf16.msra.mxu0 %v639
    %802 = vmatprep.subr.bf16.mxu0 0
    %803 = vmatpush1.bf16.msra.mxu0 %v640
    %804 = vmatprep.subr.bf16.mxu0 0
    %805 = vmatpush1.bf16.msra.mxu0 %v641
    %806 = vmatprep.subr.bf16.mxu0 0
    %807 = vmatpush1.bf16.msra.mxu0 %v642
    %808 = vmatprep.subr.bf16.mxu0 0
    %809 = vmatpush1.bf16.msra.mxu0 %v643
    %810 = vmatprep.subr.bf16.mxu0 0
    %811 = vmatpush1.bf16.msra.mxu0 %v644
    %812 = vmatprep.subr.bf16.mxu0 0
    %813 = vmatpush1.bf16.msra.mxu0 %v645
    %814 = vmatprep.subr.bf16.mxu0 0
    %815 = vmatpush1.bf16.msra.mxu0 %v646
    %816 = vmatprep.mubr.bf16.mxu0 %v226
    %817 = vmatmul.mubr.bf16.gmra.mrb[0].mxu0 %v225
    %v818 = vpop.f32.mrb[0].mxu0
    %v819 = vadd.f32 %v778, %v818
    %v820 = vpop.f32.mrb[0].mxu0
    %v821 = vpop.f32.mrb[0].mxu0
    %v822 = vadd.f32 %v781, %v821
    %v823 = vpop.f32.mrb[0].mxu0
    %824 = vdwg.mxu0
    %825 = vmatprep.subr.bf16.mxu0 0
    %826 = vmatpush1.bf16.msra.mxu0 %v647
    %827 = vmatprep.subr.bf16.mxu0 0
    %828 = vmatpush1.bf16.msra.mxu0 %v648
    %829 = vmatprep.subr.bf16.mxu0 0
    %830 = vmatpush1.bf16.msra.mxu0 %v649
    %831 = vmatprep.subr.bf16.mxu0 0
    %832 = vmatpush1.bf16.msra.mxu0 %v650
    %833 = vmatprep.subr.bf16.mxu0 0
    %834 = vmatpush1.bf16.msra.mxu0 %v651
    %835 = vmatprep.subr.bf16.mxu0 0
    %836 = vmatpush1.bf16.msra.mxu0 %v652
    %837 = vmatprep.subr.bf16.mxu0 0
    %838 = vmatpush1.bf16.msra.mxu0 %v653
    %839 = vmatprep.subr.bf16.mxu0 0
    %840 = vmatpush1.bf16.msra.mxu0 %v654
    %841 = vmatprep.subr.bf16.mxu0 0
    %842 = vmatpush1.bf16.msra.mxu0 %v655
    %843 = vmatprep.subr.bf16.mxu0 0
    %844 = vmatpush1.bf16.msra.mxu0 %v656
    %845 = vmatprep.subr.bf16.mxu0 0
    %846 = vmatpush1.bf16.msra.mxu0 %v657
    %847 = vmatprep.subr.bf16.mxu0 0
    %848 = vmatpush1.bf16.msra.mxu0 %v658
    %849 = vmatprep.subr.bf16.mxu0 0
    %850 = vmatpush1.bf16.msra.mxu0 %v659
    %851 = vmatprep.subr.bf16.mxu0 0
    %852 = vmatpush1.bf16.msra.mxu0 %v660
    %853 = vmatprep.subr.bf16.mxu0 0
    %854 = vmatpush1.bf16.msra.mxu0 %v661
    %855 = vmatprep.subr.bf16.mxu0 0
    %856 = vmatpush1.bf16.msra.mxu0 %v662
    %857 = vmatprep.mubr.bf16.mxu0 %v228
    %858 = vmatmul.mubr.bf16.gmra.mrb[0].mxu0 %v227
    %v859 = vpop.f32.mrb[0].mxu0
    %v860 = vadd.f32 %v819, %v859
    %v861 = vpop.f32.mrb[0].mxu0
    %v862 = vpop.f32.mrb[0].mxu0
    %v863 = vadd.f32 %v822, %v862
    %v864 = vpop.f32.mrb[0].mxu0
    %865 = vdwg.mxu0
    %866 = vmatprep.subr.bf16.mxu0 0
    %867 = vmatpush1.bf16.msra.mxu0 %v663
    %868 = vmatprep.subr.bf16.mxu0 0
    %869 = vmatpush1.bf16.msra.mxu0 %v664
    %870 = vmatprep.subr.bf16.mxu0 0
    %871 = vmatpush1.bf16.msra.mxu0 %v665
    %872 = vmatprep.subr.bf16.mxu0 0
    %873 = vmatpush1.bf16.msra.mxu0 %v666
    %874 = vmatprep.subr.bf16.mxu0 0
    %875 = vmatpush1.bf16.msra.mxu0 %v667
    %876 = vmatprep.subr.bf16.mxu0 0
    %877 = vmatpush1.bf16.msra.mxu0 %v668
    %878 = vmatprep.subr.bf16.mxu0 0
    %879 = vmatpush1.bf16.msra.mxu0 %v669
    %880 = vmatprep.subr.bf16.mxu0 0
    %881 = vmatpush1.bf16.msra.mxu0 %v670
    %882 = vmatprep.subr.bf16.mxu0 0
    %883 = vmatpush1.bf16.msra.mxu0 %v671
    %884 = vmatprep.subr.bf16.mxu0 0
    %885 = vmatpush1.bf16.msra.mxu0 %v672
    %886 = vmatprep.subr.bf16.mxu0 0
    %887 = vmatpush1.bf16.msra.mxu0 %v673
    %888 = vmatprep.subr.bf16.mxu0 0
    %889 = vmatpush1.bf16.msra.mxu0 %v674
    %890 = vmatprep.subr.bf16.mxu0 0
    %891 = vmatpush1.bf16.msra.mxu0 %v675
    %892 = vmatprep.subr.bf16.mxu0 0
    %893 = vmatpush1.bf16.msra.mxu0 %v676
    %894 = vmatprep.subr.bf16.mxu0 0
    %895 = vmatpush1.bf16.msra.mxu0 %v677
    %896 = vmatprep.subr.bf16.mxu0 0
    %897 = vmatpush1.bf16.msra.mxu0 %v678
    %898 = vmatprep.mubr.bf16.mxu0 %v230
    %899 = vmatmul.mubr.bf16.gmra.mrb[0].mxu0 %v229
    %v900 = vpop.f32.mrb[0].mxu0
    %v901 = vadd.f32 %v860, %v900
    %v902 = vpop.f32.mrb[0].mxu0
    %v903 = vpop.f32.mrb[0].mxu0
    %v904 = vadd.f32 %v863, %v903
    %v905 = vpop.f32.mrb[0].mxu0
    %906 = vdwg.mxu0
    %v907 = vadd.f32 %v45, %v901
    %v908 = vadd.f32 %v46, %v904
    %vm909 = vcmask 523264
    %910 = vst.msk [vmem:[#allocation2] sm:$0xff] %vm909, %v907
    %911 = vst.msk [vmem:[#allocation2 + $0x8] sm:$0xff] %vm909, %v908
    // Predicated region
    $region26: #{tpu_custom_call.1} parent=1 // pred_check
      %p912 = pneg %p22
    $region27: #{tpu_custom_call.1} parent=1 // pred_check_branch
      %914 = sbr.rel (%p912) target = $region29
    $region28: #{tpu_custom_call.1} parent=1 // pred_region
      %v915 = vld [vmem:[#allocation2] sm:$0xff]
      %v916 = vld [vmem:[#allocation2 + $0x8] sm:$0xff]
      %v917 = vld [vmem:[%s2] sm:$0x1]
      %v919 = vlaneseq
      %v920 = vshrl.u32 %v919, 7
      %v921 = vsub.s32 0, %v920
      %v922 = vrot.slane %v917, %v921
      %v924 = vadd.f32 %v915, %v922
      %v925 = vadd.f32 %v916, %v922
      %v926 = vmax.f32 %v924, 0.0
      %v927 = vmax.f32 %v925, 0.0
      %v928 = vpack.c.bf16 %v927, %v926
      %v929 = vld [vmem:[%s3] sm:$0xf]
      %v930 = vld [vmem:[%s3 + $0x4] sm:$0xf]
      %v931 = vld [vmem:[%s3 + $0x8] sm:$0xf]
      %v932 = vld [vmem:[%s3 + $0xc] sm:$0xf]
      %v933 = vld [vmem:[%s3 + $0x10] sm:$0xf]
      %v934 = vld [vmem:[%s3 + $0x14] sm:$0xf]
      %v935 = vld [vmem:[%s3 + $0x18] sm:$0xf]
      %v936 = vld [vmem:[%s3 + $0x1c] sm:$0xf]
      %v937 = vld [vmem:[%s4] sm:$0x1]
      %v939 = vlaneseq
      %v940 = vshrl.u32 %v939, 7
      %v941 = vsub.s32 0, %v940
      %v942 = vrot.slane %v937, %v941
      %v952 = vunpack.c.l.b16 %v929
      %v953 = vunpack.c.l.b16 %v930
      %v954 = vunpack.c.l.b16 %v931
      %v955 = vunpack.c.l.b16 %v932
      %v956 = vunpack.c.l.b16 %v933
      %v957 = vunpack.c.l.b16 %v934
      %v958 = vunpack.c.l.b16 %v935
      %v959 = vunpack.c.l.b16 %v936
      %v960 = vpack.c.b16 %v953, %v952
      %v961 = vpack.c.b16 %v955, %v954
      %v962 = vpack.c.b16 %v957, %v956
      %v963 = vpack.c.b16 %v959, %v958
      %v969 = vsel %vm909, %v928, 0
      %971 = vmatprep.subr.bf16.mxu0 0
      %972 = vmatpush1.bf16.msra.mxu0 %v960
      %973 = vmatprep.subr.bf16.mxu0 0
      %974 = vmatpush1.bf16.msra.mxu0 %v961
      %975 = vmatprep.subr.bf16.mxu0 0
      %976 = vmatpush1.bf16.msra.mxu0 %v962
      %977 = vmatprep.subr.bf16.mxu0 0
      %978 = vmatpush1.bf16.msra.mxu0 %v963
      %979 = vmatprep.subr.bf16.mxu0 0
      %980 = vmatpush1.bf16.msra.mxu0 0
      %981 = vmatprep.subr.bf16.mxu0 0
      %982 = vmatpush1.bf16.msra.mxu0 0
      %983 = vmatprep.subr.bf16.mxu0 0
      %984 = vmatpush1.bf16.msra.mxu0 0
      %985 = vmatprep.subr.bf16.mxu0 0
      %986 = vmatpush1.bf16.msra.mxu0 0
      %987 = vmatprep.subr.bf16.mxu0 0
      %988 = vmatpush1.bf16.msra.mxu0 0
      %989 = vmatprep.subr.bf16.mxu0 0
      %990 = vmatpush1.bf16.msra.mxu0 0
      %991 = vmatprep.subr.bf16.mxu0 0
      %992 = vmatpush1.bf16.msra.mxu0 0
      %993 = vmatprep.subr.bf16.mxu0 0
      %994 = vmatpush1.bf16.msra.mxu0 0
      %995 = vmatprep.subr.bf16.mxu0 0
      %996 = vmatpush1.bf16.msra.mxu0 0
      %997 = vmatprep.subr.bf16.mxu0 0
      %998 = vmatpush1.bf16.msra.mxu0 0
      %999 = vmatprep.subr.bf16.mxu0 0
      %1000 = vmatpush1.bf16.msra.mxu0 0
      %1001 = vmatprep.subr.bf16.mxu0 0
      %1002 = vmatpush1.bf16.msra.mxu0 0
      %1003 = vmatprep.mubr.bf16.mxu0 0
      %1004 = vmatmul.mubr.bf16.gmra.mrb[0].mxu0 %v969
      %v1005 = vpop.f32.mrb[0].mxu0
      %v1006 = vadd.f32 %v942, %v1005
      %v1007 = vpop.f32.mrb[0].mxu0
      %v1008 = vpop.f32.mrb[0].mxu0
      %v1009 = vadd.f32 %v942, %v1008
      %v1010 = vpop.f32.mrb[0].mxu0
      %1011 = vdwg.mxu0
      %1012 = vmax.xlane.f32.xlu0 %v1006
      %v1013 = vpop.xlane.xlu0 %1012
      %1014 = vmax.xlane.f32.xlu0 %v1009
      %v1015 = vpop.xlane.xlu0 %1014
      %v1016 = vsub.f32 %v1006, %v1013
      %v1017 = vsub.f32 %v1009, %v1015
      %v1018 = vmul.f32 %v1016, 1.442695
      %v1019 = vpow.pop %v1018
      %v1020 = vmul.f32 %v1017, 1.442695
      %v1021 = vpow.pop %v1020
      %1022 = vadd.xlane.f32.xlu0 %v1019
      %v1023 = vpop.xlane.xlu0 %1022
      %1024 = vadd.xlane.f32.xlu0 %v1021
      %v1025 = vpop.xlane.xlu0 %1024
      %v1026 = vrcp.pop %v1023
      %v1027 = vrcp.pop %v1025
      %v1028 = vmul.f32 %v1019, %v1026
      %v1029 = vmul.f32 %v1021, %v1027
      %1030 = vst [vmem:[#allocation3] sm:$0xff] %v1028
      %1031 = vst [vmem:[#allocation3 + $0x8] sm:$0xff] %v1029
      %s1032 = scalar_lea.vmem %s3, 32
      %v1033 = vld [vmem:[%s1032] sm:$0xf]
      %v1034 = vld [vmem:[%s1032 + $0x4] sm:$0xf]
      %v1035 = vld [vmem:[%s1032 + $0x8] sm:$0xf]
      %v1036 = vld [vmem:[%s1032 + $0xc] sm:$0xf]
      %v1037 = vld [vmem:[%s1032 + $0x10] sm:$0xf]
      %v1038 = vld [vmem:[%s1032 + $0x14] sm:$0xf]
      %v1039 = vld [vmem:[%s1032 + $0x18] sm:$0xf]
      %v1040 = vld [vmem:[%s1032 + $0x1c] sm:$0xf]
      %s1041 = scalar_lea.vmem %s4, 1
      %v1042 = vld [vmem:[%s1041] sm:$0x1]
      %v1044 = vlaneseq
      %v1045 = vshrl.u32 %v1044, 7
      %v1046 = vsub.s32 0, %v1045
      %v1047 = vrot.slane %v1042, %v1046
      %v1057 = vunpack.c.l.b16 %v1033
      %v1058 = vunpack.c.l.b16 %v1034
      %v1059 = vunpack.c.l.b16 %v1035
      %v1060 = vunpack.c.l.b16 %v1036
      %v1061 = vunpack.c.l.b16 %v1037
      %v1062 = vunpack.c.l.b16 %v1038
      %v1063 = vunpack.c.l.b16 %v1039
      %v1064 = vunpack.c.l.b16 %v1040
      %v1065 = vpack.c.b16 %v1058, %v1057
      %v1066 = vpack.c.b16 %v1060, %v1059
      %v1067 = vpack.c.b16 %v1062, %v1061
      %v1068 = vpack.c.b16 %v1064, %v1063
      %1073 = vmatprep.subr.bf16.mxu0 0
      %1074 = vmatpush1.bf16.msra.mxu0 %v1065
      %1075 = vmatprep.subr.bf16.mxu0 0
      %1076 = vmatpush1.bf16.msra.mxu0 %v1066
      %1077 = vmatprep.subr.bf16.mxu0 0
      %1078 = vmatpush1.bf16.msra.mxu0 %v1067
      %1079 = vmatprep.subr.bf16.mxu0 0
      %1080 = vmatpush1.bf16.msra.mxu0 %v1068
      %1081 = vmatprep.subr.bf16.mxu0 0
      %1082 = vmatpush1.bf16.msra.mxu0 0
      %1083 = vmatprep.subr.bf16.mxu0 0
      %1084 = vmatpush1.bf16.msra.mxu0 0
      %1085 = vmatprep.subr.bf16.mxu0 0
      %1086 = vmatpush1.bf16.msra.mxu0 0
      %1087 = vmatprep.subr.bf16.mxu0 0
      %1088 = vmatpush1.bf16.msra.mxu0 0
      %1089 = vmatprep.subr.bf16.mxu0 0
      %1090 = vmatpush1.bf16.msra.mxu0 0
      %1091 = vmatprep.subr.bf16.mxu0 0
      %1092 = vmatpush1.bf16.msra.mxu0 0
      %1093 = vmatprep.subr.bf16.mxu0 0
      %1094 = vmatpush1.bf16.msra.mxu0 0
      %1095 = vmatprep.subr.bf16.mxu0 0
      %1096 = vmatpush1.bf16.msra.mxu0 0
      %1097 = vmatprep.subr.bf16.mxu0 0
      %1098 = vmatpush1.bf16.msra.mxu0 0
      %1099 = vmatprep.subr.bf16.mxu0 0
      %1100 = vmatpush1.bf16.msra.mxu0 0
      %1101 = vmatprep.subr.bf16.mxu0 0
      %1102 = vmatpush1.bf16.msra.mxu0 0
      %1103 = vmatprep.subr.bf16.mxu0 0
      %1104 = vmatpush1.bf16.msra.mxu0 0
      %1105 = vmatprep.mubr.bf16.mxu0 0
      %1106 = vmatmul.mubr.bf16.gmra.mrb[0].mxu0 %v969
      %v1107 = vpop.f32.mrb[0].mxu0
      %v1108 = vadd.f32 %v1047, %v1107
      %v1109 = vpop.f32.mrb[0].mxu0
      %v1110 = vpop.f32.mrb[0].mxu0
      %v1111 = vadd.f32 %v1047, %v1110
      %v1112 = vpop.f32.mrb[0].mxu0
      %1113 = vdwg.mxu0
      %1114 = vmax.xlane.f32.xlu0 %v1108
      %v1115 = vpop.xlane.xlu0 %1114
      %1116 = vmax.xlane.f32.xlu0 %v1111
      %v1117 = vpop.xlane.xlu0 %1116
      %v1118 = vsub.f32 %v1108, %v1115
      %v1119 = vsub.f32 %v1111, %v1117
      %v1120 = vmul.f32 %v1118, 1.442695
      %v1121 = vpow.pop %v1120
      %v1122 = vmul.f32 %v1119, 1.442695
      %v1123 = vpow.pop %v1122
      %1124 = vadd.xlane.f32.xlu0 %v1121
      %v1125 = vpop.xlane.xlu0 %1124
      %1126 = vadd.xlane.f32.xlu0 %v1123
      %v1127 = vpop.xlane.xlu0 %1126
      %v1128 = vrcp.pop %v1125
      %v1129 = vrcp.pop %v1127
      %v1130 = vmul.f32 %v1121, %v1128
      %v1131 = vmul.f32 %v1123, %v1129
      %s1132 = scalar_lea.vmem [#allocation3], 16
      %1133 = vst [vmem:[%s1132] sm:$0xff] %v1130
      %1134 = vst [vmem:[%s1132 + $0x8] sm:$0xff] %v1131
      %s1135 = scalar_lea.vmem %s3, 64
      %v1136 = vld [vmem:[%s1135] sm:$0xf]
      %v1137 = vld [vmem:[%s1135 + $0x4] sm:$0xf]
      %v1138 = vld [vmem:[%s1135 + $0x8] sm:$0xf]
      %v1139 = vld [vmem:[%s1135 + $0xc] sm:$0xf]
      %v1140 = vld [vmem:[%s1135 + $0x10] sm:$0xf]
      %v1141 = vld [vmem:[%s1135 + $0x14] sm:$0xf]
      %v1142 = vld [vmem:[%s1135 + $0x18] sm:$0xf]
      %v1143 = vld [vmem:[%s1135 + $0x1c] sm:$0xf]
      %s1144 = scalar_lea.vmem %s4, 2
      %v1145 = vld [vmem:[%s1144] sm:$0x1]
      %v1147 = vlaneseq
      %v1148 = vshrl.u32 %v1147, 7
      %v1149 = vsub.s32 0, %v1148
      %v1150 = vrot.slane %v1145, %v1149
      %v1160 = vunpack.c.l.b16 %v1136
      %v1161 = vunpack.c.l.b16 %v1137
      %v1162 = vunpack.c.l.b16 %v1138
      %v1163 = vunpack.c.l.b16 %v1139
      %v1164 = vunpack.c.l.b16 %v1140
      %v1165 = vunpack.c.l.b16 %v1141
      %v1166 = vunpack.c.l.b16 %v1142
      %v1167 = vunpack.c.l.b16 %v1143
      %v1168 = vpack.c.b16 %v1161, %v1160
      %v1169 = vpack.c.b16 %v1163, %v1162
      %v1170 = vpack.c.b16 %v1165, %v1164
      %v1171 = vpack.c.b16 %v1167, %v1166
      %1176 = vmatprep.subr.bf16.mxu0 0
      %1177 = vmatpush1.bf16.msra.mxu0 %v1168
      %1178 = vmatprep.subr.bf16.mxu0 0
      %1179 = vmatpush1.bf16.msra.mxu0 %v1169
      %1180 = vmatprep.subr.bf16.mxu0 0
      %1181 = vmatpush1.bf16.msra.mxu0 %v1170
      %1182 = vmatprep.subr.bf16.mxu0 0
      %1183 = vmatpush1.bf16.msra.mxu0 %v1171
      %1184 = vmatprep.subr.bf16.mxu0 0
      %1185 = vmatpush1.bf16.msra.mxu0 0
      %1186 = vmatprep.subr.bf16.mxu0 0
      %1187 = vmatpush1.bf16.msra.mxu0 0
      %1188 = vmatprep.subr.bf16.mxu0 0
      %1189 = vmatpush1.bf16.msra.mxu0 0
      %1190 = vmatprep.subr.bf16.mxu0 0
      %1191 = vmatpush1.bf16.msra.mxu0 0
      %1192 = vmatprep.subr.bf16.mxu0 0
      %1193 = vmatpush1.bf16.msra.mxu0 0
      %1194 = vmatprep.subr.bf16.mxu0 0
      %1195 = vmatpush1.bf16.msra.mxu0 0
      %1196 = vmatprep.subr.bf16.mxu0 0
      %1197 = vmatpush1.bf16.msra.mxu0 0
      %1198 = vmatprep.subr.bf16.mxu0 0
      %1199 = vmatpush1.bf16.msra.mxu0 0
      %1200 = vmatprep.subr.bf16.mxu0 0
      %1201 = vmatpush1.bf16.msra.mxu0 0
      %1202 = vmatprep.subr.bf16.mxu0 0
      %1203 = vmatpush1.bf16.msra.mxu0 0
      %1204 = vmatprep.subr.bf16.mxu0 0
      %1205 = vmatpush1.bf16.msra.mxu0 0
      %1206 = vmatprep.subr.bf16.mxu0 0
      %1207 = vmatpush1.bf16.msra.mxu0 0
      %1208 = vmatprep.mubr.bf16.mxu0 0
      %1209 = vmatmul.mubr.bf16.gmra.mrb[0].mxu0 %v969
      %v1210 = vpop.f32.mrb[0].mxu0
      %v1211 = vadd.f32 %v1150, %v1210
      %v1212 = vpop.f32.mrb[0].mxu0
      %v1213 = vpop.f32.mrb[0].mxu0
      %v1214 = vadd.f32 %v1150, %v1213
      %v1215 = vpop.f32.mrb[0].mxu0
      %1216 = vdwg.mxu0
      %1217 = vmax.xlane.f32.xlu0 %v1211
      %v1218 = vpop.xlane.xlu0 %1217
      %1219 = vmax.xlane.f32.xlu0 %v1214
      %v1220 = vpop.xlane.xlu0 %1219
      %v1221 = vsub.f32 %v1211, %v1218
      %v1222 = vsub.f32 %v1214, %v1220
      %v1223 = vmul.f32 %v1221, 1.442695
      %v1224 = vpow.pop %v1223
      %v1225 = vmul.f32 %v1222, 1.442695
      %v1226 = vpow.pop %v1225
      %1227 = vadd.xlane.f32.xlu0 %v1224
      %v1228 = vpop.xlane.xlu0 %1227
      %1229 = vadd.xlane.f32.xlu0 %v1226
      %v1230 = vpop.xlane.xlu0 %1229
      %v1231 = vrcp.pop %v1228
      %v1232 = vrcp.pop %v1230
      %v1233 = vmul.f32 %v1224, %v1231
      %v1234 = vmul.f32 %v1226, %v1232
      %s1235 = scalar_lea.vmem [#allocation3], 32
      %1236 = vst [vmem:[%s1235] sm:$0xff] %v1233
      %1237 = vst [vmem:[%s1235 + $0x8] sm:$0xff] %v1234
      %s1238 = scalar_lea.vmem %s3, 96
      %v1239 = vld [vmem:[%s1238] sm:$0xf]
      %v1240 = vld [vmem:[%s1238 + $0x4] sm:$0xf]
      %v1241 = vld [vmem:[%s1238 + $0x8] sm:$0xf]
      %v1242 = vld [vmem:[%s1238 + $0xc] sm:$0xf]
      %v1243 = vld [vmem:[%s1238 + $0x10] sm:$0xf]
      %v1244 = vld [vmem:[%s1238 + $0x14] sm:$0xf]
      %v1245 = vld [vmem:[%s1238 + $0x18] sm:$0xf]
      %v1246 = vld [vmem:[%s1238 + $0x1c] sm:$0xf]
      %s1247 = scalar_lea.vmem %s4, 3
      %v1248 = vld [vmem:[%s1247] sm:$0x1]
      %v1250 = vlaneseq
      %v1251 = vshrl.u32 %v1250, 7
      %v1252 = vsub.s32 0, %v1251
      %v1253 = vrot.slane %v1248, %v1252
      %v1263 = vunpack.c.l.b16 %v1239
      %v1264 = vunpack.c.l.b16 %v1240
      %v1265 = vunpack.c.l.b16 %v1241
      %v1266 = vunpack.c.l.b16 %v1242
      %v1267 = vunpack.c.l.b16 %v1243
      %v1268 = vunpack.c.l.b16 %v1244
      %v1269 = vunpack.c.l.b16 %v1245
      %v1270 = vunpack.c.l.b16 %v1246
      %v1271 = vpack.c.b16 %v1264, %v1263
      %v1272 = vpack.c.b16 %v1266, %v1265
      %v1273 = vpack.c.b16 %v1268, %v1267
      %v1274 = vpack.c.b16 %v1270, %v1269
      %1279 = vmatprep.subr.bf16.mxu0 0
      %1280 = vmatpush1.bf16.msra.mxu0 %v1271
      %1281 = vmatprep.subr.bf16.mxu0 0
      %1282 = vmatpush1.bf16.msra.mxu0 %v1272
      %1283 = vmatprep.subr.bf16.mxu0 0
      %1284 = vmatpush1.bf16.msra.mxu0 %v1273
      %1285 = vmatprep.subr.bf16.mxu0 0
      %1286 = vmatpush1.bf16.msra.mxu0 %v1274
      %1287 = vmatprep.subr.bf16.mxu0 0
      %1288 = vmatpush1.bf16.msra.mxu0 0
      %1289 = vmatprep.subr.bf16.mxu0 0
      %1290 = vmatpush1.bf16.msra.mxu0 0
      %1291 = vmatprep.subr.bf16.mxu0 0
      %1292 = vmatpush1.bf16.msra.mxu0 0
      %1293 = vmatprep.subr.bf16.mxu0 0
      %1294 = vmatpush1.bf16.msra.mxu0 0
      %1295 = vmatprep.subr.bf16.mxu0 0
      %1296 = vmatpush1.bf16.msra.mxu0 0
      %1297 = vmatprep.subr.bf16.mxu0 0
      %1298 = vmatpush1.bf16.msra.mxu0 0
      %1299 = vmatprep.subr.bf16.mxu0 0
      %1300 = vmatpush1.bf16.msra.mxu0 0
      %1301 = vmatprep.subr.bf16.mxu0 0
      %1302 = vmatpush1.bf16.msra.mxu0 0
      %1303 = vmatprep.subr.bf16.mxu0 0
      %1304 = vmatpush1.bf16.msra.mxu0 0
      %1305 = vmatprep.subr.bf16.mxu0 0
      %1306 = vmatpush1.bf16.msra.mxu0 0
      %1307 = vmatprep.subr.bf16.mxu0 0
      %1308 = vmatpush1.bf16.msra.mxu0 0
      %1309 = vmatprep.subr.bf16.mxu0 0
      %1310 = vmatpush1.bf16.msra.mxu0 0
      %1311 = vmatprep.mubr.bf16.mxu0 0
      %1312 = vmatmul.mubr.bf16.gmra.mrb[0].mxu0 %v969
      %v1313 = vpop.f32.mrb[0].mxu0
      %v1314 = vadd.f32 %v1253, %v1313
      %v1315 = vpop.f32.mrb[0].mxu0
      %v1316 = vpop.f32.mrb[0].mxu0
      %v1317 = vadd.f32 %v1253, %v1316
      %v1318 = vpop.f32.mrb[0].mxu0
      %1319 = vdwg.mxu0
      %1320 = vmax.xlane.f32.xlu0 %v1314
      %v1321 = vpop.xlane.xlu0 %1320
      %1322 = vmax.xlane.f32.xlu0 %v1317
      %v1323 = vpop.xlane.xlu0 %1322
      %v1324 = vsub.f32 %v1314, %v1321
      %v1325 = vsub.f32 %v1317, %v1323
      %v1326 = vmul.f32 %v1324, 1.442695
      %v1327 = vpow.pop %v1326
      %v1328 = vmul.f32 %v1325, 1.442695
      %v1329 = vpow.pop %v1328
      %1330 = vadd.xlane.f32.xlu0 %v1327
      %v1331 = vpop.xlane.xlu0 %1330
      %1332 = vadd.xlane.f32.xlu0 %v1329
      %v1333 = vpop.xlane.xlu0 %1332
      %v1334 = vrcp.pop %v1331
      %v1335 = vrcp.pop %v1333
      %v1336 = vmul.f32 %v1327, %v1334
      %v1337 = vmul.f32 %v1329, %v1335
      %s1338 = scalar_lea.vmem [#allocation3], 48
      %1339 = vst [vmem:[%s1338] sm:$0xff] %v1336
      %1340 = vst [vmem:[%s1338 + $0x8] sm:$0xff] %v1337
    $region29: #{tpu_custom_call.1} parent=1 // pred_fallthru
      _
    // Predicated region
    $region30: #{tpu_custom_call.1} parent=1 // pred_check
      _
    $region31: #{tpu_custom_call.1} parent=1 // pred_check_branch
      %1342 = sbr.rel (0) target = $region33
    $region32: #{tpu_custom_call.1} parent=1 // pred_region
      #allocation6 [shape = 'u32[6]{0}', space=smem, size = 0x18, scoped, tag = 'DMA stride descriptor']
      %s1344 = ssub.s32 1024, 128
      %1345 = vsyncadd [#allocation4], %s1344
      %s1347 = sshll.u32 1, 14
      %s1348 = sxor.u32 4294967295, %s1347
      %s1351 = sshll.u32 7, 18
      %s1352 = sxor.u32 4294967295, %s1351
      %s1353 = sand.u32 0, %s1352
      %s1355 = sor.u32 %s1353, 0
      %s1357 = sshll.u32 3, 24
      %s1358 = sxor.u32 4294967295, %s1357
      %s1359 = sand.u32 %s1355, %s1358
      %s1361 = sor.u32 %s1359, 0
      %s1362 = sshll.u32 [#allocation3], 4
      %s1363 = int_to_ptr.vmem [resolvable:$true] %s1362
      %1369 = sst [smem:[#allocation6]] 256
      %s1370 = scalar_lea.smem [#allocation6], 1
      %1371 = sst [smem:[%s1370]] 32
      %s1372 = scalar_lea.smem [#allocation6], 2
      %1373 = sst [smem:[%s1372]] 1
      %s1374 = scalar_lea.smem [#allocation6], 3
      %1375 = sst [smem:[%s1374]] 32
      %s1376 = scalar_lea.smem [#allocation6], 4
      %1377 = sst [smem:[%s1376]] 32
      %s1378 = scalar_lea.smem [#allocation6], 5
      %1379 = sst [smem:[%s1378]] 2
      %1381 = dma.general %s1363, 128, %s5, [#allocation4], [#allocation5], [#allocation6], %s1361, 0
    $region33: #{tpu_custom_call.1} parent=1 // pred_fallthru
      _
    // Predicated region
    $region34: #{tpu_custom_call.1} parent=1 // pred_check
      _
    $region35: #{tpu_custom_call.1} parent=1 // pred_check_branch
      %1383 = sbr.rel (0) target = $region37
    $region36: #{tpu_custom_call.1} parent=1 // pred_region
      %1384 = dma.done [#allocation4], 1024
    $region37: #{tpu_custom_call.1} parent=1 // pred_fallthru
      _
    %1385 = vsyncpa [#allocation4], 1

</llo_original>
